<compile_context>
chip_gen: v5e
topology: v5e:2x2
jax: 0.10.0
libtpu: 0.0.40
codegen_flags: <defaults>
</compile_context>

<pallas_src>
import functools
import math

import jax
import jax.numpy as jnp
from jax import lax
from jax.experimental import pallas as pl
from jax.experimental.pallas import tpu as pltpu

# ---- small, module-consistent hyperparameters ----
BATCH = 2
SEQ = 8
D_MODEL = 32
NUM_HEADS = 4
HEAD_DIM = D_MODEL // NUM_HEADS
FFN_HIDDEN = 64
EPS = 1e-5

_WEIGHT_NAMES = ("wqkv", "bqkv", "wo", "bo",
                 "g1", "be1", "w1", "b1", "w2", "b2", "g2", "be2")


def encoder_layer_kernel(x_ref,
                         wqkv_ref, bqkv_ref, wo_ref, bo_ref,
                         g1_ref, be1_ref, w1_ref, b1_ref, w2_ref, b2_ref,
                         g2_ref, be2_ref, out_ref,
                         *, matmul_dtype):
    B, S, D = x_ref.shape
    H, hd = NUM_HEADS, HEAD_DIM
    N = B * S

    def mm(a, b):
        return jnp.dot(a.astype(matmul_dtype), b.astype(matmul_dtype),
                       preferred_element_type=jnp.float32)

    def bmm(eq, a, b):
        return jnp.einsum(eq, a.astype(matmul_dtype), b.astype(matmul_dtype),
                          preferred_element_type=jnp.float32)

    x = x_ref[...]                                   # (B, S, D)
    xf = x.reshape(N, D)                             # leading/sublane merge on tile boundary

    # ---- Multi-head self-attention ----
    # Fused QKV projection (1/sqrt(hd) already folded into the q columns host-side).
    qkv = mm(xf, wqkv_ref[...]) + bqkv_ref[...]      # (N, 3D)

    # Module convention (reshape-then-chunk): column j -> head j // (3*hd),
    # within-head index m = j % (3*hd); m in [0,hd)=q, [hd,2hd)=k, [2hd,3hd)=v.
    def head_stack(m0):
        parts = [qkv[:, h * 3 * hd + m0: h * 3 * hd + m0 + hd].reshape(B, S, hd)
                 for h in range(H)]                  # lane slices at multiples of 8
        return jnp.stack(parts, axis=0).reshape(H * B, S, hd)   # heads on leading axis

    q = head_stack(0)                                # (H*B, S, hd)
    k = head_stack(hd)
    v = head_stack(2 * hd)

    # All (head, batch) pairs in one batched score einsum / softmax / context einsum.
    s = bmm("bqd,bkd->bqk", q, k)                    # (H*B, S, S), already scaled
    s = s - jnp.max(s, axis=-1, keepdims=True)
    p = jnp.exp(s)
    p = p / jnp.sum(p, axis=-1, keepdims=True)       # exact divide for softmax parity
    ctx = bmm("bqk,bkd->bqd", p, v)                  # (H*B, S, hd)

    # Re-concatenate heads along lanes -> (N, D); single (N,D)@(D,D) output projection.
    ctx4 = ctx.reshape(H, B, S, hd)
    ctx_cat = jnp.concatenate([ctx4[h] for h in range(H)], axis=-1)   # (B, S, D)
    attn = mm(ctx_cat.reshape(N, D), wo_ref[...]) + bo_ref[...]       # (N, D)

    # dropout1: identity (eval mode)

    # ---- Add & LayerNorm 1 ----
    y = attn + xf
    mean1 = jnp.mean(y, axis=-1, keepdims=True)
    yc = y - mean1
    var1 = jnp.mean(yc * yc, axis=-1, keepdims=True)
    y = yc * lax.rsqrt(var1 + EPS)                   # rsqrt -> EUP
    y = g1_ref[...] * y + be1_ref[...]

    # ---- Position-wise feed-forward ----
    h1 = mm(y, w1_ref[...]) + b1_ref[...]
    h1 = jnp.maximum(h1, 0.0)                        # ReLU
    # dropout inside FFN: identity (eval mode)
    ff = mm(h1, w2_ref[...]) + b2_ref[...]

    # dropout2: identity (eval mode)

    # ---- Add & LayerNorm 2 ----
    z = ff + y
    mean2 = jnp.mean(z, axis=-1, keepdims=True)
    zc = z - mean2
    var2 = jnp.mean(zc * zc, axis=-1, keepdims=True)
    z = zc * lax.rsqrt(var2 + EPS)
    z = g2_ref[...] * z + be2_ref[...]

    out_ref[...] = z.reshape(B, S, D).astype(out_ref.dtype)


def prepare_kernel_params(p):
    """Host-side one-time transform.

    Keeps the module's fused (D, 3D) / (1, 3D) / (D, D) layouts untouched and only
    folds the 1/sqrt(head_dim) attention scale into the q columns of wqkv / bqkv.
    """
    hd = HEAD_DIM
    scale = 1.0 / math.sqrt(hd)
    cols = jnp.arange(3 * D_MODEL)
    col_scale = jnp.where((cols % (3 * hd)) < hd, scale, 1.0).astype(jnp.float32)
    return dict(
        wqkv=p["wqkv"] * col_scale[None, :],
        bqkv=p["bqkv"] * col_scale[None, :],
        wo=p["wo"], bo=p["bo"],
        g1=p["g1"], be1=p["be1"], w1=p["w1"], b1=p["b1"],
        w2=p["w2"], b2=p["b2"], g2=p["g2"], be2=p["be2"])


def encoder_layer(x, kp, *, matmul_dtype=jnp.float32):
    """Single fused grid step over the whole (B, S) batch.

    matmul_dtype: keep jnp.float32 at these toy sizes (exact parity with the
    reference); use jnp.bfloat16 for realistic d_model on v6e/v7x.
    """
    B, S, D = x.shape

    def full_spec(arr):
        nd = arr.ndim
        return pl.BlockSpec(arr.shape, lambda i, _nd=nd: (0,) * _nd)

    in_specs = [full_spec(x)] + [full_spec(kp[n]) for n in _WEIGHT_NAMES]

    kernel = functools.partial(encoder_layer_kernel, matmul_dtype=matmul_dtype)

    return pl.pallas_call(
        kernel,
        out_shape=jax.ShapeDtypeStruct((B, S, D), x.dtype),
        grid=(1,),
        in_specs=in_specs,
        out_specs=pl.BlockSpec((B, S, D), lambda i: (0, 0, 0)),
        compiler_params=pltpu.CompilerParams(
            dimension_semantics=("arbitrary",)),
    )(x, *(kp[n] for n in _WEIGHT_NAMES))


def reference_encoder_layer(x, p):
    """Pure-JAX reference mirroring the PyTorch forward (eval mode)."""
    B, S, D = x.shape
    residual = x
    qkv = x @ p["wqkv"] + p["bqkv"][0]                       # (B, S, 3D)
    qkv = qkv.reshape(B, S, NUM_HEADS, 3 * HEAD_DIM).transpose(0, 2, 1, 3)
    q, k, v = jnp.split(qkv, 3, axis=-1)                     # each (B, H, S, hd)
    s = jnp.einsum("bhqd,bhkd->bhqk", q, k) / math.sqrt(HEAD_DIM)
    attn = jax.nn.softmax(s, axis=-1)
    vals = jnp.einsum("bhqk,bhkd->bhqd", attn, v)
    vals = vals.transpose(0, 2, 1, 3).reshape(B, S, D)
    out = vals @ p["wo"] + p["bo"][0]

    y = out + residual
    m = y.mean(-1, keepdims=True)
    var = ((y - m) ** 2).mean(-1, keepdims=True)
    y = p["g1"][0] * ((y - m) / jnp.sqrt(var + EPS)) + p["be1"][0]

    h = jnp.maximum(y @ p["w1"] + p["b1"][0], 0.0)
    ff = h @ p["w2"] + p["b2"][0]

    z = ff + y
    m2 = z.mean(-1, keepdims=True)
    var2 = ((z - m2) ** 2).mean(-1, keepdims=True)
    z = p["g2"][0] * ((z - m2) / jnp.sqrt(var2 + EPS)) + p["be2"][0]
    return z


def init_params(key):
    ks = jax.random.split(key, 8)
    scale = 0.05
    return {
        "wqkv": jax.random.normal(ks[0], (D_MODEL, 3 * D_MODEL), jnp.float32) * scale,
        "bqkv": jax.random.normal(ks[1], (1, 3 * D_MODEL), jnp.float32) * scale,
        "wo":   jax.random.normal(ks[2], (D_MODEL, D_MODEL), jnp.float32) * scale,
        "bo":   jax.random.normal(ks[3], (1, D_MODEL), jnp.float32) * scale,
        "g1":   jnp.ones((1, D_MODEL), jnp.float32),
        "be1":  jnp.zeros((1, D_MODEL), jnp.float32),
        "w1":   jax.random.normal(ks[4], (D_MODEL, FFN_HIDDEN), jnp.float32) * scale,
        "b1":   jax.random.normal(ks[5], (1, FFN_HIDDEN), jnp.float32) * scale,
        "w2":   jax.random.normal(ks[6], (FFN_HIDDEN, D_MODEL), jnp.float32) * scale,
        "b2":   jax.random.normal(ks[7], (1, D_MODEL), jnp.float32) * scale,
        "g2":   jnp.ones((1, D_MODEL), jnp.float32),
        "be2":  jnp.zeros((1, D_MODEL), jnp.float32),
    }


if __name__ == "__main__":
    key = jax.random.PRNGKey(0)
    xkey, pkey = jax.random.split(key)
    x = jax.random.normal(xkey, (BATCH, SEQ, D_MODEL), jnp.float32)
    params = init_params(pkey)
    kernel_params = prepare_kernel_params(params)

    out = encoder_layer(x, kernel_params)
    out = jax.block_until_ready(out)

    ref = reference_encoder_layer(x, params)
    assert out.shape == (BATCH, SEQ, D_MODEL)
    assert bool(jnp.all(jnp.isfinite(out)))
    # Exact softmax divide restored, so the tolerance is back to 1e-4.
    assert bool(jnp.allclose(out, ref, atol=1e-4, rtol=1e-4)), "mismatch vs JAX reference"

    print("KERNEL_OK")
</pallas_src>

<mosaic_0001>
module attributes {stable_mosaic.version = 11 : i64} {
  func.func @encoder_layer_kernel(%arg0: i32, %arg1: memref<2x8x32xf32, #tpu.memory_space<vmem>>, %arg2: memref<32x96xf32, #tpu.memory_space<vmem>>, %arg3: memref<1x96xf32, #tpu.memory_space<vmem>>, %arg4: memref<32x32xf32, #tpu.memory_space<vmem>>, %arg5: memref<1x32xf32, #tpu.memory_space<vmem>>, %arg6: memref<1x32xf32, #tpu.memory_space<vmem>>, %arg7: memref<1x32xf32, #tpu.memory_space<vmem>>, %arg8: memref<32x64xf32, #tpu.memory_space<vmem>>, %arg9: memref<1x64xf32, #tpu.memory_space<vmem>>, %arg10: memref<64x32xf32, #tpu.memory_space<vmem>>, %arg11: memref<1x32xf32, #tpu.memory_space<vmem>>, %arg12: memref<1x32xf32, #tpu.memory_space<vmem>>, %arg13: memref<1x32xf32, #tpu.memory_space<vmem>>, %arg14: memref<2x8x32xf32, #tpu.memory_space<vmem>>) attributes {dimension_semantics = [#tpu.dimension_semantics<arbitrary>], iteration_bounds = array<i64: 1>, scalar_prefetch = 0 : i64, scratch_operands = 0 : i64, tpu.core_type = #tpu.core_type<tc>, window_params = [{pipeline_mode = #tpu.pipeline_mode<synchronous>, transform_indices = @transform_0, window_bounds = array<i64: 2, 8, 32>}, {pipeline_mode = #tpu.pipeline_mode<synchronous>, transform_indices = @transform_1, window_bounds = array<i64: 32, 96>}, {pipeline_mode = #tpu.pipeline_mode<synchronous>, transform_indices = @transform_2, window_bounds = array<i64: 1, 96>}, {pipeline_mode = #tpu.pipeline_mode<synchronous>, transform_indices = @transform_3, window_bounds = array<i64: 32, 32>}, {pipeline_mode = #tpu.pipeline_mode<synchronous>, transform_indices = @transform_4, window_bounds = array<i64: 1, 32>}, {pipeline_mode = #tpu.pipeline_mode<synchronous>, transform_indices = @transform_5, window_bounds = array<i64: 1, 32>}, {pipeline_mode = #tpu.pipeline_mode<synchronous>, transform_indices = @transform_6, window_bounds = array<i64: 1, 32>}, {pipeline_mode = #tpu.pipeline_mode<synchronous>, transform_indices = @transform_7, window_bounds = array<i64: 32, 64>}, {pipeline_mode = #tpu.pipeline_mode<synchronous>, transform_indices = @transform_8, window_bounds = array<i64: 1, 64>}, {pipeline_mode = #tpu.pipeline_mode<synchronous>, transform_indices = @transform_9, window_bounds = array<i64: 64, 32>}, {pipeline_mode = #tpu.pipeline_mode<synchronous>, transform_indices = @transform_10, window_bounds = array<i64: 1, 32>}, {pipeline_mode = #tpu.pipeline_mode<synchronous>, transform_indices = @transform_11, window_bounds = array<i64: 1, 32>}, {pipeline_mode = #tpu.pipeline_mode<synchronous>, transform_indices = @transform_12, window_bounds = array<i64: 1, 32>}, {pipeline_mode = #tpu.pipeline_mode<synchronous>, transform_indices = @transform_13, window_bounds = array<i64: 2, 8, 32>}]} {
    %c0 = arith.constant 0 : index
    %c0_0 = arith.constant 0 : index
    %c0_1 = arith.constant 0 : index
    %0 = vector.load %arg1[%c0, %c0_0, %c0_1] : memref<2x8x32xf32, #tpu.memory_space<vmem>>, vector<2x8x32xf32>
    %1 = vector.shape_cast %0 : vector<2x8x32xf32> to vector<16x32xf32>
    %c0_2 = arith.constant 0 : index
    %c0_3 = arith.constant 0 : index
    %2 = vector.load %arg2[%c0_2, %c0_3] : memref<32x96xf32, #tpu.memory_space<vmem>>, vector<32x96xf32>
    %cst = arith.constant dense<0.000000e+00> : vector<16x96xf32>
    %3 = tpu.matmul %1, %2, %cst {dimension_numbers = #tpu.dot_dimension_numbers<[1], [0], [0], [1], [0, 0, 1, 1], [], []>} : vector<16x32xf32>, vector<32x96xf32>, vector<16x96xf32> -> vector<16x96xf32>
    %c0_4 = arith.constant 0 : index
    %c0_5 = arith.constant 0 : index
    %4 = vector.load %arg3[%c0_4, %c0_5] : memref<1x96xf32, #tpu.memory_space<vmem>>, vector<1x96xf32>
    %5 = vector.broadcast %4 : vector<1x96xf32> to vector<16x96xf32>
    %6 = arith.addf %3, %5 : vector<16x96xf32>
    %7 = vector.extract_strided_slice %6 {offsets = [0, 0], sizes = [16, 8], strides = [1, 1]} : vector<16x96xf32> to vector<16x8xf32>
    %8 = vector.shape_cast %7 : vector<16x8xf32> to vector<2x8x8xf32>
    %9 = vector.extract_strided_slice %6 {offsets = [0, 24], sizes = [16, 8], strides = [1, 1]} : vector<16x96xf32> to vector<16x8xf32>
    %10 = vector.shape_cast %9 : vector<16x8xf32> to vector<2x8x8xf32>
    %11 = vector.extract_strided_slice %6 {offsets = [0, 48], sizes = [16, 8], strides = [1, 1]} : vector<16x96xf32> to vector<16x8xf32>
    %12 = vector.shape_cast %11 : vector<16x8xf32> to vector<2x8x8xf32>
    %13 = vector.extract_strided_slice %6 {offsets = [0, 72], sizes = [16, 8], strides = [1, 1]} : vector<16x96xf32> to vector<16x8xf32>
    %14 = vector.shape_cast %13 : vector<16x8xf32> to vector<2x8x8xf32>
    %15 = vector.shape_cast %8 : vector<2x8x8xf32> to vector<1x2x8x8xf32>
    %16 = vector.shape_cast %10 : vector<2x8x8xf32> to vector<1x2x8x8xf32>
    %17 = vector.shape_cast %12 : vector<2x8x8xf32> to vector<1x2x8x8xf32>
    %18 = vector.shape_cast %14 : vector<2x8x8xf32> to vector<1x2x8x8xf32>
    %19 = tpu.concatenate %15, %16, %17, %18 in 0 : vector<1x2x8x8xf32>, vector<1x2x8x8xf32>, vector<1x2x8x8xf32>, vector<1x2x8x8xf32> -> vector<4x2x8x8xf32>
    %20 = vector.shape_cast %19 : vector<4x2x8x8xf32> to vector<8x8x8xf32>
    %21 = vector.extract_strided_slice %6 {offsets = [0, 8], sizes = [16, 8], strides = [1, 1]} : vector<16x96xf32> to vector<16x8xf32>
    %22 = vector.shape_cast %21 : vector<16x8xf32> to vector<2x8x8xf32>
    %23 = vector.extract_strided_slice %6 {offsets = [0, 32], sizes = [16, 8], strides = [1, 1]} : vector<16x96xf32> to vector<16x8xf32>
    %24 = vector.shape_cast %23 : vector<16x8xf32> to vector<2x8x8xf32>
    %25 = vector.extract_strided_slice %6 {offsets = [0, 56], sizes = [16, 8], strides = [1, 1]} : vector<16x96xf32> to vector<16x8xf32>
    %26 = vector.shape_cast %25 : vector<16x8xf32> to vector<2x8x8xf32>
    %27 = vector.extract_strided_slice %6 {offsets = [0, 80], sizes = [16, 8], strides = [1, 1]} : vector<16x96xf32> to vector<16x8xf32>
    %28 = vector.shape_cast %27 : vector<16x8xf32> to vector<2x8x8xf32>
    %29 = vector.shape_cast %22 : vector<2x8x8xf32> to vector<1x2x8x8xf32>
    %30 = vector.shape_cast %24 : vector<2x8x8xf32> to vector<1x2x8x8xf32>
    %31 = vector.shape_cast %26 : vector<2x8x8xf32> to vector<1x2x8x8xf32>
    %32 = vector.shape_cast %28 : vector<2x8x8xf32> to vector<1x2x8x8xf32>
    %33 = tpu.concatenate %29, %30, %31, %32 in 0 : vector<1x2x8x8xf32>, vector<1x2x8x8xf32>, vector<1x2x8x8xf32>, vector<1x2x8x8xf32> -> vector<4x2x8x8xf32>
    %34 = vector.shape_cast %33 : vector<4x2x8x8xf32> to vector<8x8x8xf32>
    %35 = vector.extract_strided_slice %6 {offsets = [0, 16], sizes = [16, 8], strides = [1, 1]} : vector<16x96xf32> to vector<16x8xf32>
    %36 = vector.shape_cast %35 : vector<16x8xf32> to vector<2x8x8xf32>
    %37 = vector.extract_strided_slice %6 {offsets = [0, 40], sizes = [16, 8], strides = [1, 1]} : vector<16x96xf32> to vector<16x8xf32>
    %38 = vector.shape_cast %37 : vector<16x8xf32> to vector<2x8x8xf32>
    %39 = vector.extract_strided_slice %6 {offsets = [0, 64], sizes = [16, 8], strides = [1, 1]} : vector<16x96xf32> to vector<16x8xf32>
    %40 = vector.shape_cast %39 : vector<16x8xf32> to vector<2x8x8xf32>
    %41 = vector.extract_strided_slice %6 {offsets = [0, 88], sizes = [16, 8], strides = [1, 1]} : vector<16x96xf32> to vector<16x8xf32>
    %42 = vector.shape_cast %41 : vector<16x8xf32> to vector<2x8x8xf32>
    %43 = vector.shape_cast %36 : vector<2x8x8xf32> to vector<1x2x8x8xf32>
    %44 = vector.shape_cast %38 : vector<2x8x8xf32> to vector<1x2x8x8xf32>
    %45 = vector.shape_cast %40 : vector<2x8x8xf32> to vector<1x2x8x8xf32>
    %46 = vector.shape_cast %42 : vector<2x8x8xf32> to vector<1x2x8x8xf32>
    %47 = tpu.concatenate %43, %44, %45, %46 in 0 : vector<1x2x8x8xf32>, vector<1x2x8x8xf32>, vector<1x2x8x8xf32>, vector<1x2x8x8xf32> -> vector<4x2x8x8xf32>
    %48 = vector.shape_cast %47 : vector<4x2x8x8xf32> to vector<8x8x8xf32>
    "tpu.trace_start"() <{level = 10 : i32, message = "bqd,bkd->bqk"}> : () -> ()
    %cst_6 = arith.constant dense<0.000000e+00> : vector<8x8x8xf32>
    %49 = tpu.matmul %20, %34, %cst_6 {dimension_numbers = #tpu.dot_dimension_numbers<[2], [2], [1], [1], [0, 0, 0, 1, 1, 1], [0], [0]>} : vector<8x8x8xf32>, vector<8x8x8xf32>, vector<8x8x8xf32> -> vector<8x8x8xf32>
    "tpu.trace_stop"() : () -> ()
    %cst_7 = arith.constant dense<0xFF800000> : vector<8x8xf32>
    %50 = vector.multi_reduction <maximumf>, %49, %cst_7 [2] : vector<8x8x8xf32> to vector<8x8xf32>
    %51 = vector.shape_cast %50 : vector<8x8xf32> to vector<8x8x1xf32>
    %52 = vector.broadcast %51 : vector<8x8x1xf32> to vector<8x8x8xf32>
    %53 = arith.subf %49, %52 : vector<8x8x8xf32>
    %54 = math.exp %53 : vector<8x8x8xf32>
    %cst_8 = arith.constant dense<0.000000e+00> : vector<8x8xf32>
    %55 = vector.multi_reduction <add>, %54, %cst_8 [2] : vector<8x8x8xf32> to vector<8x8xf32>
    %56 = vector.shape_cast %55 : vector<8x8xf32> to vector<8x8x1xf32>
    %57 = vector.broadcast %56 : vector<8x8x1xf32> to vector<8x8x8xf32>
    %58 = arith.divf %54, %57 : vector<8x8x8xf32>
    "tpu.trace_start"() <{level = 10 : i32, message = "bqk,bkd->bqd"}> : () -> ()
    %cst_9 = arith.constant dense<0.000000e+00> : vector<8x8x8xf32>
    %59 = tpu.matmul %58, %48, %cst_9 {dimension_numbers = #tpu.dot_dimension_numbers<[2], [1], [1], [2], [0, 0, 0, 1, 1, 2], [0], [0]>} : vector<8x8x8xf32>, vector<8x8x8xf32>, vector<8x8x8xf32> -> vector<8x8x8xf32>
    "tpu.trace_stop"() : () -> ()
    %60 = vector.shape_cast %59 : vector<8x8x8xf32> to vector<4x2x8x8xf32>
    %61 = vector.extract_strided_slice %60 {offsets = [0, 0, 0, 0], sizes = [1, 2, 8, 8], strides = [1, 1, 1, 1]} : vector<4x2x8x8xf32> to vector<1x2x8x8xf32>
    %62 = vector.shape_cast %61 : vector<1x2x8x8xf32> to vector<2x8x8xf32>
    %63 = vector.extract_strided_slice %60 {offsets = [1, 0, 0, 0], sizes = [1, 2, 8, 8], strides = [1, 1, 1, 1]} : vector<4x2x8x8xf32> to vector<1x2x8x8xf32>
    %64 = vector.shape_cast %63 : vector<1x2x8x8xf32> to vector<2x8x8xf32>
    %65 = vector.extract_strided_slice %60 {offsets = [2, 0, 0, 0], sizes = [1, 2, 8, 8], strides = [1, 1, 1, 1]} : vector<4x2x8x8xf32> to vector<1x2x8x8xf32>
    %66 = vector.shape_cast %65 : vector<1x2x8x8xf32> to vector<2x8x8xf32>
    %67 = vector.extract_strided_slice %60 {offsets = [3, 0, 0, 0], sizes = [1, 2, 8, 8], strides = [1, 1, 1, 1]} : vector<4x2x8x8xf32> to vector<1x2x8x8xf32>
    %68 = vector.shape_cast %67 : vector<1x2x8x8xf32> to vector<2x8x8xf32>
    %69 = tpu.concatenate %62, %64, %66, %68 in 2 : vector<2x8x8xf32>, vector<2x8x8xf32>, vector<2x8x8xf32>, vector<2x8x8xf32> -> vector<2x8x32xf32>
    %70 = vector.shape_cast %69 : vector<2x8x32xf32> to vector<16x32xf32>
    %c0_10 = arith.constant 0 : index
    %c0_11 = arith.constant 0 : index
    %71 = vector.load %arg4[%c0_10, %c0_11] : memref<32x32xf32, #tpu.memory_space<vmem>>, vector<32x32xf32>
    %cst_12 = arith.constant dense<0.000000e+00> : vector<16x32xf32>
    %72 = tpu.matmul %70, %71, %cst_12 {dimension_numbers = #tpu.dot_dimension_numbers<[1], [0], [0], [1], [0, 0, 1, 1], [], []>} : vector<16x32xf32>, vector<32x32xf32>, vector<16x32xf32> -> vector<16x32xf32>
    %c0_13 = arith.constant 0 : index
    %c0_14 = arith.constant 0 : index
    %73 = vector.load %arg5[%c0_13, %c0_14] : memref<1x32xf32, #tpu.memory_space<vmem>>, vector<1x32xf32>
    %74 = vector.broadcast %73 : vector<1x32xf32> to vector<16x32xf32>
    %75 = arith.addf %72, %74 : vector<16x32xf32>
    %76 = arith.addf %75, %1 : vector<16x32xf32>
    %cst_15 = arith.constant dense<0.000000e+00> : vector<16xf32>
    %77 = vector.multi_reduction <add>, %76, %cst_15 [1] : vector<16x32xf32> to vector<16xf32>
    %78 = vector.shape_cast %77 : vector<16xf32> to vector<16x1xf32>
    %cst_16 = arith.constant 3.200000e+01 : f32
    %79 = vector.broadcast %cst_16 : f32 to vector<16x1xf32>
    %80 = arith.divf %78, %79 : vector<16x1xf32>
    %81 = vector.broadcast %80 : vector<16x1xf32> to vector<16x32xf32>
    %82 = arith.subf %76, %81 : vector<16x32xf32>
    %83 = arith.mulf %82, %82 : vector<16x32xf32>
    %cst_17 = arith.constant dense<0.000000e+00> : vector<16xf32>
    %84 = vector.multi_reduction <add>, %83, %cst_17 [1] : vector<16x32xf32> to vector<16xf32>
    %85 = vector.shape_cast %84 : vector<16xf32> to vector<16x1xf32>
    %cst_18 = arith.constant 3.200000e+01 : f32
    %86 = vector.broadcast %cst_18 : f32 to vector<16x1xf32>
    %87 = arith.divf %85, %86 : vector<16x1xf32>
    %cst_19 = arith.constant 9.99999974E-6 : f32
    %88 = vector.broadcast %cst_19 : f32 to vector<16x1xf32>
    %89 = arith.addf %87, %88 : vector<16x1xf32>
    %90 = math.rsqrt %89 : vector<16x1xf32>
    %91 = vector.broadcast %90 : vector<16x1xf32> to vector<16x32xf32>
    %92 = arith.mulf %82, %91 : vector<16x32xf32>
    %c0_20 = arith.constant 0 : index
    %c0_21 = arith.constant 0 : index
    %93 = vector.load %arg6[%c0_20, %c0_21] : memref<1x32xf32, #tpu.memory_space<vmem>>, vector<1x32xf32>
    %94 = vector.broadcast %93 : vector<1x32xf32> to vector<16x32xf32>
    %95 = arith.mulf %94, %92 : vector<16x32xf32>
    %c0_22 = arith.constant 0 : index
    %c0_23 = arith.constant 0 : index
    %96 = vector.load %arg7[%c0_22, %c0_23] : memref<1x32xf32, #tpu.memory_space<vmem>>, vector<1x32xf32>
    %97 = vector.broadcast %96 : vector<1x32xf32> to vector<16x32xf32>
    %98 = arith.addf %95, %97 : vector<16x32xf32>
    %c0_24 = arith.constant 0 : index
    %c0_25 = arith.constant 0 : index
    %99 = vector.load %arg8[%c0_24, %c0_25] : memref<32x64xf32, #tpu.memory_space<vmem>>, vector<32x64xf32>
    %cst_26 = arith.constant dense<0.000000e+00> : vector<16x64xf32>
    %100 = tpu.matmul %98, %99, %cst_26 {dimension_numbers = #tpu.dot_dimension_numbers<[1], [0], [0], [1], [0, 0, 1, 1], [], []>} : vector<16x32xf32>, vector<32x64xf32>, vector<16x64xf32> -> vector<16x64xf32>
    %c0_27 = arith.constant 0 : index
    %c0_28 = arith.constant 0 : index
    %101 = vector.load %arg9[%c0_27, %c0_28] : memref<1x64xf32, #tpu.memory_space<vmem>>, vector<1x64xf32>
    %102 = vector.broadcast %101 : vector<1x64xf32> to vector<16x64xf32>
    %103 = arith.addf %100, %102 : vector<16x64xf32>
    %cst_29 = arith.constant 0.000000e+00 : f32
    %104 = vector.broadcast %cst_29 : f32 to vector<16x64xf32>
    %105 = arith.maximumf %103, %104 : vector<16x64xf32>
    %c0_30 = arith.constant 0 : index
    %c0_31 = arith.constant 0 : index
    %106 = vector.load %arg10[%c0_30, %c0_31] : memref<64x32xf32, #tpu.memory_space<vmem>>, vector<64x32xf32>
    %cst_32 = arith.constant dense<0.000000e+00> : vector<16x32xf32>
    %107 = tpu.matmul %105, %106, %cst_32 {dimension_numbers = #tpu.dot_dimension_numbers<[1], [0], [0], [1], [0, 0, 1, 1], [], []>} : vector<16x64xf32>, vector<64x32xf32>, vector<16x32xf32> -> vector<16x32xf32>
    %c0_33 = arith.constant 0 : index
    %c0_34 = arith.constant 0 : index
    %108 = vector.load %arg11[%c0_33, %c0_34] : memref<1x32xf32, #tpu.memory_space<vmem>>, vector<1x32xf32>
    %109 = vector.broadcast %108 : vector<1x32xf32> to vector<16x32xf32>
    %110 = arith.addf %107, %109 : vector<16x32xf32>
    %111 = arith.addf %110, %98 : vector<16x32xf32>
    %cst_35 = arith.constant dense<0.000000e+00> : vector<16xf32>
    %112 = vector.multi_reduction <add>, %111, %cst_35 [1] : vector<16x32xf32> to vector<16xf32>
    %113 = vector.shape_cast %112 : vector<16xf32> to vector<16x1xf32>
    %cst_36 = arith.constant 3.200000e+01 : f32
    %114 = vector.broadcast %cst_36 : f32 to vector<16x1xf32>
    %115 = arith.divf %113, %114 : vector<16x1xf32>
    %116 = vector.broadcast %115 : vector<16x1xf32> to vector<16x32xf32>
    %117 = arith.subf %111, %116 : vector<16x32xf32>
    %118 = arith.mulf %117, %117 : vector<16x32xf32>
    %cst_37 = arith.constant dense<0.000000e+00> : vector<16xf32>
    %119 = vector.multi_reduction <add>, %118, %cst_37 [1] : vector<16x32xf32> to vector<16xf32>
    %120 = vector.shape_cast %119 : vector<16xf32> to vector<16x1xf32>
    %cst_38 = arith.constant 3.200000e+01 : f32
    %121 = vector.broadcast %cst_38 : f32 to vector<16x1xf32>
    %122 = arith.divf %120, %121 : vector<16x1xf32>
    %cst_39 = arith.constant 9.99999974E-6 : f32
    %123 = vector.broadcast %cst_39 : f32 to vector<16x1xf32>
    %124 = arith.addf %122, %123 : vector<16x1xf32>
    %125 = math.rsqrt %124 : vector<16x1xf32>
    %126 = vector.broadcast %125 : vector<16x1xf32> to vector<16x32xf32>
    %127 = arith.mulf %117, %126 : vector<16x32xf32>
    %c0_40 = arith.constant 0 : index
    %c0_41 = arith.constant 0 : index
    %128 = vector.load %arg12[%c0_40, %c0_41] : memref<1x32xf32, #tpu.memory_space<vmem>>, vector<1x32xf32>
    %129 = vector.broadcast %128 : vector<1x32xf32> to vector<16x32xf32>
    %130 = arith.mulf %129, %127 : vector<16x32xf32>
    %c0_42 = arith.constant 0 : index
    %c0_43 = arith.constant 0 : index
    %131 = vector.load %arg13[%c0_42, %c0_43] : memref<1x32xf32, #tpu.memory_space<vmem>>, vector<1x32xf32>
    %132 = vector.broadcast %131 : vector<1x32xf32> to vector<16x32xf32>
    %133 = arith.addf %130, %132 : vector<16x32xf32>
    %134 = vector.shape_cast %133 : vector<16x32xf32> to vector<2x8x32xf32>
    %c0_44 = arith.constant 0 : index
    %c0_45 = arith.constant 0 : index
    %c0_46 = arith.constant 0 : index
    %135 = vector.load %arg14[%c0_44, %c0_45, %c0_46] : memref<2x8x32xf32, #tpu.memory_space<vmem>>, vector<2x8x32xf32>
    tpu.vector_store %arg14[%c0_44, %c0_45, %c0_46], %134 {strides = array<i32>} : memref<2x8x32xf32, #tpu.memory_space<vmem>>, vector<2x8x32xf32>,
    return
  }
  func.func @transform_0(%arg0: i32) -> (i32, i32, i32) {
    %c0_i32 = arith.constant 0 : i32
    %c0_i32_0 = arith.constant 0 : i32
    %c0_i32_1 = arith.constant 0 : i32
    %c0_i32_2 = arith.constant 0 : i32
    return %c0_i32, %c0_i32_0, %c0_i32_1 : i32, i32, i32
  }
  func.func @transform_1(%arg0: i32) -> (i32, i32) {
    %c0_i32 = arith.constant 0 : i32
    %c0_i32_0 = arith.constant 0 : i32
    %c0_i32_1 = arith.constant 0 : i32
    return %c0_i32, %c0_i32_0 : i32, i32
  }
  func.func @transform_2(%arg0: i32) -> (i32, i32) {
    %c0_i32 = arith.constant 0 : i32
    %c0_i32_0 = arith.constant 0 : i32
    %c0_i32_1 = arith.constant 0 : i32
    return %c0_i32, %c0_i32_0 : i32, i32
  }
  func.func @transform_3(%arg0: i32) -> (i32, i32) {
    %c0_i32 = arith.constant 0 : i32
    %c0_i32_0 = arith.constant 0 : i32
    %c0_i32_1 = arith.constant 0 : i32
    return %c0_i32, %c0_i32_0 : i32, i32
  }
  func.func @transform_4(%arg0: i32) -> (i32, i32) {
    %c0_i32 = arith.constant 0 : i32
    %c0_i32_0 = arith.constant 0 : i32
    %c0_i32_1 = arith.constant 0 : i32
    return %c0_i32, %c0_i32_0 : i32, i32
  }
  func.func @transform_5(%arg0: i32) -> (i32, i32) {
    %c0_i32 = arith.constant 0 : i32
    %c0_i32_0 = arith.constant 0 : i32
    %c0_i32_1 = arith.constant 0 : i32
    return %c0_i32, %c0_i32_0 : i32, i32
  }
  func.func @transform_6(%arg0: i32) -> (i32, i32) {
    %c0_i32 = arith.constant 0 : i32
    %c0_i32_0 = arith.constant 0 : i32
    %c0_i32_1 = arith.constant 0 : i32
    return %c0_i32, %c0_i32_0 : i32, i32
  }
  func.func @transform_7(%arg0: i32) -> (i32, i32) {
    %c0_i32 = arith.constant 0 : i32
    %c0_i32_0 = arith.constant 0 : i32
    %c0_i32_1 = arith.constant 0 : i32
    return %c0_i32, %c0_i32_0 : i32, i32
  }
  func.func @transform_8(%arg0: i32) -> (i32, i32) {
    %c0_i32 = arith.constant 0 : i32
    %c0_i32_0 = arith.constant 0 : i32
    %c0_i32_1 = arith.constant 0 : i32
    return %c0_i32, %c0_i32_0 : i32, i32
  }
  func.func @transform_9(%arg0: i32) -> (i32, i32) {
    %c0_i32 = arith.constant 0 : i32
    %c0_i32_0 = arith.constant 0 : i32
    %c0_i32_1 = arith.constant 0 : i32
    return %c0_i32, %c0_i32_0 : i32, i32
  }
  func.func @transform_10(%arg0: i32) -> (i32, i32) {
    %c0_i32 = arith.constant 0 : i32
    %c0_i32_0 = arith.constant 0 : i32
    %c0_i32_1 = arith.constant 0 : i32
    return %c0_i32, %c0_i32_0 : i32, i32
  }
  func.func @transform_11(%arg0: i32) -> (i32, i32) {
    %c0_i32 = arith.constant 0 : i32
    %c0_i32_0 = arith.constant 0 : i32
    %c0_i32_1 = arith.constant 0 : i32
    return %c0_i32, %c0_i32_0 : i32, i32
  }
  func.func @transform_12(%arg0: i32) -> (i32, i32) {
    %c0_i32 = arith.constant 0 : i32
    %c0_i32_0 = arith.constant 0 : i32
    %c0_i32_1 = arith.constant 0 : i32
    return %c0_i32, %c0_i32_0 : i32, i32
  }
  func.func @transform_13(%arg0: i32) -> (i32, i32, i32) {
    %c0_i32 = arith.constant 0 : i32
    %c0_i32_0 = arith.constant 0 : i32
    %c0_i32_1 = arith.constant 0 : i32
    %c0_i32_2 = arith.constant 0 : i32
    return %c0_i32, %c0_i32_0, %c0_i32_1 : i32, i32, i32
  }
}

</mosaic_0001>

<llo_original>
// kernel: tpu_custom_call.1
$region0: #{tpu_custom_call.1}
  #allocation0 [shape = 'u32[]', space=smem, size = 0x4, offset = 0x4, fixed_abs, tag = 'smem constant byte address 0x4 - core index']
  #allocation1 [shape = 'u32[72,128]{1,0:T(1,128)}', space=vmem, size = 0x9000, scoped, tag = 'internal scratch']
  %s0 = inlined_call_operand.hbm [shape: f32[2,8,32], index: 0, kind: input, shape index: {}]
  %s1 = inlined_call_operand.vmem [shape: f32[32,96], index: 1, kind: input, shape index: {}]
  %s2 = inlined_call_operand.vmem [shape: f32[1,96], index: 2, kind: input, shape index: {}]
  %s3 = inlined_call_operand.vmem [shape: f32[32,32], index: 3, kind: input, shape index: {}]
  %s4 = inlined_call_operand.vmem [shape: f32[1,32], index: 4, kind: input, shape index: {}]
  %s5 = inlined_call_operand.vmem [shape: f32[1,32], index: 5, kind: input, shape index: {}]
  %s6 = inlined_call_operand.vmem [shape: f32[1,32], index: 6, kind: input, shape index: {}]
  %s7 = inlined_call_operand.vmem [shape: f32[32,64], index: 7, kind: input, shape index: {}]
  %s8 = inlined_call_operand.vmem [shape: f32[1,64], index: 8, kind: input, shape index: {}]
  %s9 = inlined_call_operand.vmem [shape: f32[64,32], index: 9, kind: input, shape index: {}]
  %s10 = inlined_call_operand.vmem [shape: f32[1,32], index: 10, kind: input, shape index: {}]
  %s11 = inlined_call_operand.vmem [shape: f32[1,32], index: 11, kind: input, shape index: {}]
  %s12 = inlined_call_operand.vmem [shape: f32[1,32], index: 12, kind: input, shape index: {}]
  %s13 = inlined_call_operand.hbm [shape: f32[2,8,32], index: 13, kind: output, shape index: {}]
  %s14 = sld [smem:[#allocation0]]
  $region66: #{tpu_custom_call.1} parent=0
    _
  %s16 = ssub.s32 1, %s14
  %s17 = scalar_select 0, %s16, %s14
  $region1: #{tpu_custom_call.1} parent=0
    #allocation2 [shape = 'u8[8192]{0}', space=vmem, size = 0x2000, scoped, tag = 'input window, operand 0, single buffered']
    #allocation3 [shape = 's32[1]{0}', space=sflag, size = 0x4, scoped, tag = 'scoped memory for tpu_custom_call.1']
    #allocation4 [shape = 's32[1]{0}', space=sflag, size = 0x4, scoped, tag = 'scoped memory for tpu_custom_call.1']
    #allocation5 [shape = 'u8[8192]{0}', space=vmem, size = 0x2000, scoped, tag = 'output window, operand 0, single buffered']
    %18 = vsyncpa [#allocation3], 0
    %19 = vsyncpa [#allocation4], 0
    // Predicated region
    $region2: #{tpu_custom_call.1} parent=1 // pred_check
      _
    $region3: #{tpu_custom_call.1} parent=1 // pred_check_branch
      %21 = sbr.rel (0) target = $region5
    $region4: #{tpu_custom_call.1} parent=1 // pred_region
      %23 = vsyncadd [#allocation3], 0
      %s24 = sshll.u32 %s0, 4
      %s25 = int_to_ptr.hbm [resolvable:$true] %s24
      %s26 = sshll.u32 [#allocation2], 4
      %s27 = int_to_ptr.vmem [resolvable:$true] %s26
      %32 = dma.hbm_to_vmem [thread:$0]  %s25, 256, %s27, [#allocation3], 128, 128, 8
    $region5: #{tpu_custom_call.1} parent=1 // pred_fallthru
      _
    // Predicated region
    $region6: #{tpu_custom_call.1} parent=1 // pred_check
      _
    $region7: #{tpu_custom_call.1} parent=1 // pred_check_branch
      %34 = sbr.rel (0) target = $region9
    $region8: #{tpu_custom_call.1} parent=1 // pred_region
      _
    $region9: #{tpu_custom_call.1} parent=1 // pred_fallthru
      _
    // Predicated region
    $region10: #{tpu_custom_call.1} parent=1 // pred_check
      _
    $region11: #{tpu_custom_call.1} parent=1 // pred_check_branch
      %36 = sbr.rel (0) target = $region13
    $region12: #{tpu_custom_call.1} parent=1 // pred_region
      _
    $region13: #{tpu_custom_call.1} parent=1 // pred_fallthru
      _
    // Predicated region
    $region14: #{tpu_custom_call.1} parent=1 // pred_check
      _
    $region15: #{tpu_custom_call.1} parent=1 // pred_check_branch
      %38 = sbr.rel (0) target = $region17
    $region16: #{tpu_custom_call.1} parent=1 // pred_region
      _
    $region17: #{tpu_custom_call.1} parent=1 // pred_fallthru
      _
    // Predicated region
    $region18: #{tpu_custom_call.1} parent=1 // pred_check
      _
    $region19: #{tpu_custom_call.1} parent=1 // pred_check_branch
      %40 = sbr.rel (0) target = $region21
    $region20: #{tpu_custom_call.1} parent=1 // pred_region
      _
    $region21: #{tpu_custom_call.1} parent=1 // pred_fallthru
      _
    // Predicated region
    $region22: #{tpu_custom_call.1} parent=1 // pred_check
      _
    $region23: #{tpu_custom_call.1} parent=1 // pred_check_branch
      %42 = sbr.rel (0) target = $region25
    $region24: #{tpu_custom_call.1} parent=1 // pred_region
      _
    $region25: #{tpu_custom_call.1} parent=1 // pred_fallthru
      _
    // Predicated region
    $region26: #{tpu_custom_call.1} parent=1 // pred_check
      _
    $region27: #{tpu_custom_call.1} parent=1 // pred_check_branch
      %44 = sbr.rel (0) target = $region29
    $region28: #{tpu_custom_call.1} parent=1 // pred_region
      _
    $region29: #{tpu_custom_call.1} parent=1 // pred_fallthru
      _
    // Predicated region
    $region30: #{tpu_custom_call.1} parent=1 // pred_check
      _
    $region31: #{tpu_custom_call.1} parent=1 // pred_check_branch
      %46 = sbr.rel (0) target = $region33
    $region32: #{tpu_custom_call.1} parent=1 // pred_region
      _
    $region33: #{tpu_custom_call.1} parent=1 // pred_fallthru
      _
    // Predicated region
    $region34: #{tpu_custom_call.1} parent=1 // pred_check
      _
    $region35: #{tpu_custom_call.1} parent=1 // pred_check_branch
      %48 = sbr.rel (0) target = $region37
    $region36: #{tpu_custom_call.1} parent=1 // pred_region
      _
    $region37: #{tpu_custom_call.1} parent=1 // pred_fallthru
      _
    // Predicated region
    $region38: #{tpu_custom_call.1} parent=1 // pred_check
      _
    $region39: #{tpu_custom_call.1} parent=1 // pred_check_branch
      %50 = sbr.rel (0) target = $region41
    $region40: #{tpu_custom_call.1} parent=1 // pred_region
      _
    $region41: #{tpu_custom_call.1} parent=1 // pred_fallthru
      _
    // Predicated region
    $region42: #{tpu_custom_call.1} parent=1 // pred_check
      _
    $region43: #{tpu_custom_call.1} parent=1 // pred_check_branch
      %52 = sbr.rel (0) target = $region45
    $region44: #{tpu_custom_call.1} parent=1 // pred_region
      _
    $region45: #{tpu_custom_call.1} parent=1 // pred_fallthru
      _
    // Predicated region
    $region46: #{tpu_custom_call.1} parent=1 // pred_check
      _
    $region47: #{tpu_custom_call.1} parent=1 // pred_check_branch
      %54 = sbr.rel (0) target = $region49
    $region48: #{tpu_custom_call.1} parent=1 // pred_region
      _
    $region49: #{tpu_custom_call.1} parent=1 // pred_fallthru
      _
    // Predicated region
    $region50: #{tpu_custom_call.1} parent=1 // pred_check
      _
    $region51: #{tpu_custom_call.1} parent=1 // pred_check_branch
      %56 = sbr.rel (0) target = $region53
    $region52: #{tpu_custom_call.1} parent=1 // pred_region
      _
    $region53: #{tpu_custom_call.1} parent=1 // pred_fallthru
      _
    // Predicated region
    $region54: #{tpu_custom_call.1} parent=1 // pred_check
      _
    $region55: #{tpu_custom_call.1} parent=1 // pred_check_branch
      %58 = sbr.rel (0) target = $region57
    $region56: #{tpu_custom_call.1} parent=1 // pred_region
      %60 = dma.done [#allocation3], 256
    $region57: #{tpu_custom_call.1} parent=1 // pred_fallthru
      _
    %v61 = vld [vmem:[#allocation2] sm:$0xff]
    %v62 = vld [vmem:[#allocation2 + $0x8] sm:$0xff]
    %v63 = vld [vmem:[%s1] sm:$0xff]
    %v64 = vld [vmem:[%s1 + $0x8] sm:$0xff]
    %v65 = vld [vmem:[%s1 + $0x10] sm:$0xff]
    %v66 = vld [vmem:[%s1 + $0x18] sm:$0xff]
    %v67 = vld [vmem:[%s2] sm:$0x1]
    %v69 = vperm.slane %v67, 0
    %vm71 = vcmask 261120
    %v73 = vsel %vm71, %v61, 0
    %v76 = vsel %vm71, %v62, 0
    %78 = vmatpush.msra.mxu0 0.0
    %79 = vmatpush.msra.mxu0 0.0
    %80 = vmatpush.msra.mxu0 0.0
    %81 = vmatpush.msra.mxu0 0.0
    %82 = vmatpush.msra.mxu0 0.0
    %83 = vmatpush.msra.mxu0 0.0
    %84 = vmatpush.msra.mxu0 0.0
    %85 = vmatpush.msra.mxu0 0.0
    %86 = vmatpush.msra.mxu0 0.0
    %87 = vmatpush.msra.mxu0 0.0
    %88 = vmatpush.msra.mxu0 0.0
    %89 = vmatpush.msra.mxu0 0.0
    %90 = vmatpush.msra.mxu0 %v66
    %91 = vmatpush.msra.mxu0 %v65
    %92 = vmatpush.msra.mxu0 %v64
    %93 = vmatpush.msra.mxu0 %v63
    %94 = vmatmul.f32.gmra.mxu0 %v73
    %v95 = vpop.f32.mrf.mxu0
    %v96 = vadd.f32 %v69, %v95
    %97 = vmatmul.f32.gmra.mxu0 %v76
    %v98 = vpop.f32.mrf.mxu0
    %v99 = vadd.f32 %v69, %v98
    %100 = vdwg.mxu0
    %103 = vrot.lane.b32.xlu0 %v96, 104
    %v104 = vpop.permute.xlu0 %103
    %105 = vrot.lane.b32.xlu0 %v99, 104
    %v106 = vpop.permute.xlu0 %105
    %107 = vrot.lane.b32.xlu0 %v96, 80
    %v108 = vpop.permute.xlu0 %107
    %109 = vrot.lane.b32.xlu0 %v99, 80
    %v110 = vpop.permute.xlu0 %109
    %111 = vrot.lane.b32.xlu0 %v96, 56
    %v112 = vpop.permute.xlu0 %111
    %113 = vrot.lane.b32.xlu0 %v99, 56
    %v114 = vpop.permute.xlu0 %113
    %115 = vrot.lane.b32.xlu0 %v96, 120
    %v116 = vpop.permute.xlu0 %115
    %vm117 = vcmask 64512
    %v118 = vsel %vm117, %v96, 0
    %v120 = vsel %vm117, %v116, 0
    %122 = vmatpush.xpose.msra.mxu0 0.0
    %123 = vmatpush.xpose.msra.mxu0 0.0
    %124 = vmatpush.xpose.msra.mxu0 0.0
    %125 = vmatpush.xpose.msra.mxu0 0.0
    %126 = vmatpush.xpose.msra.mxu0 0.0
    %127 = vmatpush.xpose.msra.mxu0 0.0
    %128 = vmatpush.xpose.msra.mxu0 0.0
    %129 = vmatpush.xpose.msra.mxu0 0.0
    %130 = vmatpush.xpose.msra.mxu0 0.0
    %131 = vmatpush.xpose.msra.mxu0 0.0
    %132 = vmatpush.xpose.msra.mxu0 0.0
    %133 = vmatpush.xpose.msra.mxu0 0.0
    %134 = vmatpush.xpose.msra.mxu0 0.0
    %135 = vmatpush.xpose.msra.mxu0 0.0
    %136 = vmatpush.xpose.msra.mxu0 0.0
    %137 = vmatpush.xpose.msra.mxu0 %v120
    %138 = vmatmul.f32.gmra.mxu0 %v118
    %v139 = vpop.f32.mrf.mxu0
    %v140 = vadd.f32 0.0, %v139
    %141 = vdwg.mxu0
    %142 = vrot.lane.b32.xlu0 %v99, 120
    %v143 = vpop.permute.xlu0 %142
    %v144 = vsel %vm117, %v99, 0
    %v146 = vsel %vm117, %v143, 0
    %148 = vmatpush.xpose.msra.mxu0 0.0
    %149 = vmatpush.xpose.msra.mxu0 0.0
    %150 = vmatpush.xpose.msra.mxu0 0.0
    %151 = vmatpush.xpose.msra.mxu0 0.0
    %152 = vmatpush.xpose.msra.mxu0 0.0
    %153 = vmatpush.xpose.msra.mxu0 0.0
    %154 = vmatpush.xpose.msra.mxu0 0.0
    %155 = vmatpush.xpose.msra.mxu0 0.0
    %156 = vmatpush.xpose.msra.mxu0 0.0
    %157 = vmatpush.xpose.msra.mxu0 0.0
    %158 = vmatpush.xpose.msra.mxu0 0.0
    %159 = vmatpush.xpose.msra.mxu0 0.0
    %160 = vmatpush.xpose.msra.mxu0 0.0
    %161 = vmatpush.xpose.msra.mxu0 0.0
    %162 = vmatpush.xpose.msra.mxu0 0.0
    %163 = vmatpush.xpose.msra.mxu0 %v146
    %164 = vmatmul.f32.gmra.mxu0 %v144
    %v165 = vpop.f32.mrf.mxu0
    %v166 = vadd.f32 0.0, %v165
    %167 = vdwg.mxu0
    %168 = vrot.lane.b32.xlu0 %v104, 120
    %v169 = vpop.permute.xlu0 %168
    %v170 = vsel %vm117, %v104, 0
    %v172 = vsel %vm117, %v169, 0
    %174 = vmatpush.xpose.msra.mxu0 0.0
    %175 = vmatpush.xpose.msra.mxu0 0.0
    %176 = vmatpush.xpose.msra.mxu0 0.0
    %177 = vmatpush.xpose.msra.mxu0 0.0
    %178 = vmatpush.xpose.msra.mxu0 0.0
    %179 = vmatpush.xpose.msra.mxu0 0.0
    %180 = vmatpush.xpose.msra.mxu0 0.0
    %181 = vmatpush.xpose.msra.mxu0 0.0
    %182 = vmatpush.xpose.msra.mxu0 0.0
    %183 = vmatpush.xpose.msra.mxu0 0.0
    %184 = vmatpush.xpose.msra.mxu0 0.0
    %185 = vmatpush.xpose.msra.mxu0 0.0
    %186 = vmatpush.xpose.msra.mxu0 0.0
    %187 = vmatpush.xpose.msra.mxu0 0.0
    %188 = vmatpush.xpose.msra.mxu0 0.0
    %189 = vmatpush.xpose.msra.mxu0 %v172
    %190 = vmatmul.f32.gmra.mxu0 %v170
    %v191 = vpop.f32.mrf.mxu0
    %v192 = vadd.f32 0.0, %v191
    %193 = vdwg.mxu0
    %194 = vrot.lane.b32.xlu0 %v106, 120
    %v195 = vpop.permute.xlu0 %194
    %v196 = vsel %vm117, %v106, 0
    %v198 = vsel %vm117, %v195, 0
    %200 = vmatpush.xpose.msra.mxu0 0.0
    %201 = vmatpush.xpose.msra.mxu0 0.0
    %202 = vmatpush.xpose.msra.mxu0 0.0
    %203 = vmatpush.xpose.msra.mxu0 0.0
    %204 = vmatpush.xpose.msra.mxu0 0.0
    %205 = vmatpush.xpose.msra.mxu0 0.0
    %206 = vmatpush.xpose.msra.mxu0 0.0
    %207 = vmatpush.xpose.msra.mxu0 0.0
    %208 = vmatpush.xpose.msra.mxu0 0.0
    %209 = vmatpush.xpose.msra.mxu0 0.0
    %210 = vmatpush.xpose.msra.mxu0 0.0
    %211 = vmatpush.xpose.msra.mxu0 0.0
    %212 = vmatpush.xpose.msra.mxu0 0.0
    %213 = vmatpush.xpose.msra.mxu0 0.0
    %214 = vmatpush.xpose.msra.mxu0 0.0
    %215 = vmatpush.xpose.msra.mxu0 %v198
    %216 = vmatmul.f32.gmra.mxu0 %v196
    %v217 = vpop.f32.mrf.mxu0
    %v218 = vadd.f32 0.0, %v217
    %219 = vdwg.mxu0
    %220 = vrot.lane.b32.xlu0 %v108, 120
    %v221 = vpop.permute.xlu0 %220
    %v222 = vsel %vm117, %v108, 0
    %v224 = vsel %vm117, %v221, 0
    %226 = vmatpush.xpose.msra.mxu0 0.0
    %227 = vmatpush.xpose.msra.mxu0 0.0
    %228 = vmatpush.xpose.msra.mxu0 0.0
    %229 = vmatpush.xpose.msra.mxu0 0.0
    %230 = vmatpush.xpose.msra.mxu0 0.0
    %231 = vmatpush.xpose.msra.mxu0 0.0
    %232 = vmatpush.xpose.msra.mxu0 0.0
    %233 = vmatpush.xpose.msra.mxu0 0.0
    %234 = vmatpush.xpose.msra.mxu0 0.0
    %235 = vmatpush.xpose.msra.mxu0 0.0
    %236 = vmatpush.xpose.msra.mxu0 0.0
    %237 = vmatpush.xpose.msra.mxu0 0.0
    %238 = vmatpush.xpose.msra.mxu0 0.0
    %239 = vmatpush.xpose.msra.mxu0 0.0
    %240 = vmatpush.xpose.msra.mxu0 0.0
    %241 = vmatpush.xpose.msra.mxu0 %v224
    %242 = vmatmul.f32.gmra.mxu0 %v222
    %v243 = vpop.f32.mrf.mxu0
    %v244 = vadd.f32 0.0, %v243
    %245 = vdwg.mxu0
    %246 = vrot.lane.b32.xlu0 %v110, 120
    %v247 = vpop.permute.xlu0 %246
    %v248 = vsel %vm117, %v110, 0
    %v250 = vsel %vm117, %v247, 0
    %252 = vmatpush.xpose.msra.mxu0 0.0
    %253 = vmatpush.xpose.msra.mxu0 0.0
    %254 = vmatpush.xpose.msra.mxu0 0.0
    %255 = vmatpush.xpose.msra.mxu0 0.0
    %256 = vmatpush.xpose.msra.mxu0 0.0
    %257 = vmatpush.xpose.msra.mxu0 0.0
    %258 = vmatpush.xpose.msra.mxu0 0.0
    %259 = vmatpush.xpose.msra.mxu0 0.0
    %260 = vmatpush.xpose.msra.mxu0 0.0
    %261 = vmatpush.xpose.msra.mxu0 0.0
    %262 = vmatpush.xpose.msra.mxu0 0.0
    %263 = vmatpush.xpose.msra.mxu0 0.0
    %264 = vmatpush.xpose.msra.mxu0 0.0
    %265 = vmatpush.xpose.msra.mxu0 0.0
    %266 = vmatpush.xpose.msra.mxu0 0.0
    %267 = vmatpush.xpose.msra.mxu0 %v250
    %268 = vmatmul.f32.gmra.mxu0 %v248
    %v269 = vpop.f32.mrf.mxu0
    %v270 = vadd.f32 0.0, %v269
    %271 = vdwg.mxu0
    %272 = vrot.lane.b32.xlu0 %v112, 120
    %v273 = vpop.permute.xlu0 %272
    %v274 = vsel %vm117, %v112, 0
    %v276 = vsel %vm117, %v273, 0
    %278 = vmatpush.xpose.msra.mxu0 0.0
    %279 = vmatpush.xpose.msra.mxu0 0.0
    %280 = vmatpush.xpose.msra.mxu0 0.0
    %281 = vmatpush.xpose.msra.mxu0 0.0
    %282 = vmatpush.xpose.msra.mxu0 0.0
    %283 = vmatpush.xpose.msra.mxu0 0.0
    %284 = vmatpush.xpose.msra.mxu0 0.0
    %285 = vmatpush.xpose.msra.mxu0 0.0
    %286 = vmatpush.xpose.msra.mxu0 0.0
    %287 = vmatpush.xpose.msra.mxu0 0.0
    %288 = vmatpush.xpose.msra.mxu0 0.0
    %289 = vmatpush.xpose.msra.mxu0 0.0
    %290 = vmatpush.xpose.msra.mxu0 0.0
    %291 = vmatpush.xpose.msra.mxu0 0.0
    %292 = vmatpush.xpose.msra.mxu0 0.0
    %293 = vmatpush.xpose.msra.mxu0 %v276
    %294 = vmatmul.f32.gmra.mxu0 %v274
    %v295 = vpop.f32.mrf.mxu0
    %v296 = vadd.f32 0.0, %v295
    %297 = vdwg.mxu0
    %298 = vrot.lane.b32.xlu0 %v114, 120
    %v299 = vpop.permute.xlu0 %298
    %v300 = vsel %vm117, %v114, 0
    %v302 = vsel %vm117, %v299, 0
    %304 = vmatpush.xpose.msra.mxu0 0.0
    %305 = vmatpush.xpose.msra.mxu0 0.0
    %306 = vmatpush.xpose.msra.mxu0 0.0
    %307 = vmatpush.xpose.msra.mxu0 0.0
    %308 = vmatpush.xpose.msra.mxu0 0.0
    %309 = vmatpush.xpose.msra.mxu0 0.0
    %310 = vmatpush.xpose.msra.mxu0 0.0
    %311 = vmatpush.xpose.msra.mxu0 0.0
    %312 = vmatpush.xpose.msra.mxu0 0.0
    %313 = vmatpush.xpose.msra.mxu0 0.0
    %314 = vmatpush.xpose.msra.mxu0 0.0
    %315 = vmatpush.xpose.msra.mxu0 0.0
    %316 = vmatpush.xpose.msra.mxu0 0.0
    %317 = vmatpush.xpose.msra.mxu0 0.0
    %318 = vmatpush.xpose.msra.mxu0 0.0
    %319 = vmatpush.xpose.msra.mxu0 %v302
    %320 = vmatmul.f32.gmra.mxu0 %v300
    %v321 = vpop.f32.mrf.mxu0
    %v322 = vadd.f32 0.0, %v321
    %323 = vdwg.mxu0
    %v324 = vsel %vm117, %v140, -inf
    %325 = vmax.xlane.f32.xlu0 %v324
    %v326 = vpop.xlane.xlu0 %325
    %v327 = vsel %vm117, %v166, -inf
    %328 = vmax.xlane.f32.xlu0 %v327
    %v329 = vpop.xlane.xlu0 %328
    %v330 = vsel %vm117, %v192, -inf
    %331 = vmax.xlane.f32.xlu0 %v330
    %v332 = vpop.xlane.xlu0 %331
    %v333 = vsel %vm117, %v218, -inf
    %334 = vmax.xlane.f32.xlu0 %v333
    %v335 = vpop.xlane.xlu0 %334
    %v336 = vsel %vm117, %v244, -inf
    %337 = vmax.xlane.f32.xlu0 %v336
    %v338 = vpop.xlane.xlu0 %337
    %v339 = vsel %vm117, %v270, -inf
    %340 = vmax.xlane.f32.xlu0 %v339
    %v341 = vpop.xlane.xlu0 %340
    %v342 = vsel %vm117, %v296, -inf
    %343 = vmax.xlane.f32.xlu0 %v342
    %v344 = vpop.xlane.xlu0 %343
    %v345 = vsel %vm117, %v322, -inf
    %346 = vmax.xlane.f32.xlu0 %v345
    %v347 = vpop.xlane.xlu0 %346
    %v348 = vsub.f32 %v140, %v326
    %v349 = vsub.f32 %v166, %v329
    %v350 = vsub.f32 %v192, %v332
    %v351 = vsub.f32 %v218, %v335
    %v352 = vsub.f32 %v244, %v338
    %v353 = vsub.f32 %v270, %v341
    %v354 = vsub.f32 %v296, %v344
    %v355 = vsub.f32 %v322, %v347
    %v356 = vmul.f32 %v348, 1.442695
    %v357 = vpow.pop %v356
    %v358 = vmul.f32 %v349, 1.442695
    %v359 = vpow.pop %v358
    %v360 = vmul.f32 %v350, 1.442695
    %v361 = vpow.pop %v360
    %v362 = vmul.f32 %v351, 1.442695
    %v363 = vpow.pop %v362
    %v364 = vmul.f32 %v352, 1.442695
    %v365 = vpow.pop %v364
    %v366 = vmul.f32 %v353, 1.442695
    %v367 = vpow.pop %v366
    %v368 = vmul.f32 %v354, 1.442695
    %v369 = vpow.pop %v368
    %v370 = vmul.f32 %v355, 1.442695
    %v371 = vpow.pop %v370
    %v372 = vsel %vm117, %v357, 0.0
    %373 = vadd.xlane.f32.xlu0 %v372
    %v374 = vpop.xlane.xlu0 %373
    %v375 = vsel %vm117, %v359, 0.0
    %376 = vadd.xlane.f32.xlu0 %v375
    %v377 = vpop.xlane.xlu0 %376
    %v378 = vsel %vm117, %v361, 0.0
    %379 = vadd.xlane.f32.xlu0 %v378
    %v380 = vpop.xlane.xlu0 %379
    %v381 = vsel %vm117, %v363, 0.0
    %382 = vadd.xlane.f32.xlu0 %v381
    %v383 = vpop.xlane.xlu0 %382
    %v384 = vsel %vm117, %v365, 0.0
    %385 = vadd.xlane.f32.xlu0 %v384
    %v386 = vpop.xlane.xlu0 %385
    %v387 = vsel %vm117, %v367, 0.0
    %388 = vadd.xlane.f32.xlu0 %v387
    %v389 = vpop.xlane.xlu0 %388
    %v390 = vsel %vm117, %v369, 0.0
    %391 = vadd.xlane.f32.xlu0 %v390
    %v392 = vpop.xlane.xlu0 %391
    %v393 = vsel %vm117, %v371, 0.0
    %394 = vadd.xlane.f32.xlu0 %v393
    %v395 = vpop.xlane.xlu0 %394
    %v396 = vrcp.pop %v374
    %v397 = vmul.f32 %v374, %v396
    %v398 = vsub.f32 1.0, %v397
    %v399 = vmul.f32 %v396, %v398
    %v400 = vadd.f32 %v396, %v399
    %vm401 = vweird.f32 %v374
    %vm402 = vweird.f32 %v396
    %vm403 = vmor %vm401, %vm402
    %v404 = vsel %vm403, %v396, %v400
    %v405 = vand.u32 2147483647, %v374
    %vm406 = vcmp.eq.f32.partialorder %v405, 8.507059e+37
    %v407 = vand.u32 %v374, 2147483648
    %v408 = vor.u32 1.1754944e-38, %v407
    %v409 = vsel %vm406, %v408, %v404
    %v410 = vmul.f32 %v357, %v409
    %v411 = vrcp.pop %v377
    %v412 = vmul.f32 %v377, %v411
    %v413 = vsub.f32 1.0, %v412
    %v414 = vmul.f32 %v411, %v413
    %v415 = vadd.f32 %v411, %v414
    %vm416 = vweird.f32 %v377
    %vm417 = vweird.f32 %v411
    %vm418 = vmor %vm416, %vm417
    %v419 = vsel %vm418, %v411, %v415
    %v420 = vand.u32 2147483647, %v377
    %vm421 = vcmp.eq.f32.partialorder %v420, 8.507059e+37
    %v422 = vand.u32 %v377, 2147483648
    %v423 = vor.u32 1.1754944e-38, %v422
    %v424 = vsel %vm421, %v423, %v419
    %v425 = vmul.f32 %v359, %v424
    %v426 = vrcp.pop %v380
    %v427 = vmul.f32 %v380, %v426
    %v428 = vsub.f32 1.0, %v427
    %v429 = vmul.f32 %v426, %v428
    %v430 = vadd.f32 %v426, %v429
    %vm431 = vweird.f32 %v380
    %vm432 = vweird.f32 %v426
    %vm433 = vmor %vm431, %vm432
    %v434 = vsel %vm433, %v426, %v430
    %v435 = vand.u32 2147483647, %v380
    %vm436 = vcmp.eq.f32.partialorder %v435, 8.507059e+37
    %v437 = vand.u32 %v380, 2147483648
    %v438 = vor.u32 1.1754944e-38, %v437
    %v439 = vsel %vm436, %v438, %v434
    %v440 = vmul.f32 %v361, %v439
    %v441 = vrcp.pop %v383
    %v442 = vmul.f32 %v383, %v441
    %v443 = vsub.f32 1.0, %v442
    %v444 = vmul.f32 %v441, %v443
    %v445 = vadd.f32 %v441, %v444
    %vm446 = vweird.f32 %v383
    %vm447 = vweird.f32 %v441
    %vm448 = vmor %vm446, %vm447
    %v449 = vsel %vm448, %v441, %v445
    %v450 = vand.u32 2147483647, %v383
    %vm451 = vcmp.eq.f32.partialorder %v450, 8.507059e+37
    %v452 = vand.u32 %v383, 2147483648
    %v453 = vor.u32 1.1754944e-38, %v452
    %v454 = vsel %vm451, %v453, %v449
    %v455 = vmul.f32 %v363, %v454
    %v456 = vrcp.pop %v386
    %v457 = vmul.f32 %v386, %v456
    %v458 = vsub.f32 1.0, %v457
    %v459 = vmul.f32 %v456, %v458
    %v460 = vadd.f32 %v456, %v459
    %vm461 = vweird.f32 %v386
    %vm462 = vweird.f32 %v456
    %vm463 = vmor %vm461, %vm462
    %v464 = vsel %vm463, %v456, %v460
    %v465 = vand.u32 2147483647, %v386
    %vm466 = vcmp.eq.f32.partialorder %v465, 8.507059e+37
    %v467 = vand.u32 %v386, 2147483648
    %v468 = vor.u32 1.1754944e-38, %v467
    %v469 = vsel %vm466, %v468, %v464
    %v470 = vmul.f32 %v365, %v469
    %v471 = vrcp.pop %v389
    %v472 = vmul.f32 %v389, %v471
    %v473 = vsub.f32 1.0, %v472
    %v474 = vmul.f32 %v471, %v473
    %v475 = vadd.f32 %v471, %v474
    %vm476 = vweird.f32 %v389
    %vm477 = vweird.f32 %v471
    %vm478 = vmor %vm476, %vm477
    %v479 = vsel %vm478, %v471, %v475
    %v480 = vand.u32 2147483647, %v389
    %vm481 = vcmp.eq.f32.partialorder %v480, 8.507059e+37
    %v482 = vand.u32 %v389, 2147483648
    %v483 = vor.u32 1.1754944e-38, %v482
    %v484 = vsel %vm481, %v483, %v479
    %v485 = vmul.f32 %v367, %v484
    %v486 = vrcp.pop %v392
    %v487 = vmul.f32 %v392, %v486
    %v488 = vsub.f32 1.0, %v487
    %v489 = vmul.f32 %v486, %v488
    %v490 = vadd.f32 %v486, %v489
    %vm491 = vweird.f32 %v392
    %vm492 = vweird.f32 %v486
    %vm493 = vmor %vm491, %vm492
    %v494 = vsel %vm493, %v486, %v490
    %v495 = vand.u32 2147483647, %v392
    %vm496 = vcmp.eq.f32.partialorder %v495, 8.507059e+37
    %v497 = vand.u32 %v392, 2147483648
    %v498 = vor.u32 1.1754944e-38, %v497
    %v499 = vsel %vm496, %v498, %v494
    %v500 = vmul.f32 %v369, %v499
    %v501 = vrcp.pop %v395
    %v502 = vmul.f32 %v395, %v501
    %v503 = vsub.f32 1.0, %v502
    %v504 = vmul.f32 %v501, %v503
    %v505 = vadd.f32 %v501, %v504
    %vm506 = vweird.f32 %v395
    %vm507 = vweird.f32 %v501
    %vm508 = vmor %vm506, %vm507
    %v509 = vsel %vm508, %v501, %v505
    %v510 = vand.u32 2147483647, %v395
    %vm511 = vcmp.eq.f32.partialorder %v510, 8.507059e+37
    %v512 = vand.u32 %v395, 2147483648
    %v513 = vor.u32 1.1754944e-38, %v512
    %v514 = vsel %vm511, %v513, %v509
    %v515 = vmul.f32 %v371, %v514
    %516 = vrot.lane.b32.xlu0 %v96, 112
    %v517 = vpop.permute.xlu0 %516
    %v520 = vsel %vm117, %v410, 0
    %522 = vmatpush.msra.mxu0 0.0
    %523 = vmatpush.msra.mxu0 0.0
    %524 = vmatpush.msra.mxu0 0.0
    %525 = vmatpush.msra.mxu0 0.0
    %526 = vmatpush.msra.mxu0 0.0
    %527 = vmatpush.msra.mxu0 0.0
    %528 = vmatpush.msra.mxu0 0.0
    %529 = vmatpush.msra.mxu0 0.0
    %530 = vmatpush.msra.mxu0 0.0
    %531 = vmatpush.msra.mxu0 0.0
    %532 = vmatpush.msra.mxu0 0.0
    %533 = vmatpush.msra.mxu0 0.0
    %534 = vmatpush.msra.mxu0 0.0
    %535 = vmatpush.msra.mxu0 0.0
    %536 = vmatpush.msra.mxu0 0.0
    %537 = vmatpush.msra.mxu0 %v517
    %538 = vmatmul.f32.gmra.mxu0 %v520
    %v539 = vpop.f32.mrf.mxu0
    %v540 = vadd.f32 0.0, %v539
    %541 = vdwg.mxu0
    %542 = vrot.lane.b32.xlu0 %v99, 112
    %v543 = vpop.permute.xlu0 %542
    %v546 = vsel %vm117, %v425, 0
    %548 = vmatpush.msra.mxu0 0.0
    %549 = vmatpush.msra.mxu0 0.0
    %550 = vmatpush.msra.mxu0 0.0
    %551 = vmatpush.msra.mxu0 0.0
    %552 = vmatpush.msra.mxu0 0.0
    %553 = vmatpush.msra.mxu0 0.0
    %554 = vmatpush.msra.mxu0 0.0
    %555 = vmatpush.msra.mxu0 0.0
    %556 = vmatpush.msra.mxu0 0.0
    %557 = vmatpush.msra.mxu0 0.0
    %558 = vmatpush.msra.mxu0 0.0
    %559 = vmatpush.msra.mxu0 0.0
    %560 = vmatpush.msra.mxu0 0.0
    %561 = vmatpush.msra.mxu0 0.0
    %562 = vmatpush.msra.mxu0 0.0
    %563 = vmatpush.msra.mxu0 %v543
    %564 = vmatmul.f32.gmra.mxu0 %v546
    %v565 = vpop.f32.mrf.mxu0
    %v566 = vadd.f32 0.0, %v565
    %567 = vdwg.mxu0
    %568 = vrot.lane.b32.xlu0 %v104, 112
    %v569 = vpop.permute.xlu0 %568
    %v572 = vsel %vm117, %v440, 0
    %574 = vmatpush.msra.mxu0 0.0
    %575 = vmatpush.msra.mxu0 0.0
    %576 = vmatpush.msra.mxu0 0.0
    %577 = vmatpush.msra.mxu0 0.0
    %578 = vmatpush.msra.mxu0 0.0
    %579 = vmatpush.msra.mxu0 0.0
    %580 = vmatpush.msra.mxu0 0.0
    %581 = vmatpush.msra.mxu0 0.0
    %582 = vmatpush.msra.mxu0 0.0
    %583 = vmatpush.msra.mxu0 0.0
    %584 = vmatpush.msra.mxu0 0.0
    %585 = vmatpush.msra.mxu0 0.0
    %586 = vmatpush.msra.mxu0 0.0
    %587 = vmatpush.msra.mxu0 0.0
    %588 = vmatpush.msra.mxu0 0.0
    %589 = vmatpush.msra.mxu0 %v569
    %590 = vmatmul.f32.gmra.mxu0 %v572
    %v591 = vpop.f32.mrf.mxu0
    %v592 = vadd.f32 0.0, %v591
    %593 = vdwg.mxu0
    %594 = vrot.lane.b32.xlu0 %v106, 112
    %v595 = vpop.permute.xlu0 %594
    %v598 = vsel %vm117, %v455, 0
    %600 = vmatpush.msra.mxu0 0.0
    %601 = vmatpush.msra.mxu0 0.0
    %602 = vmatpush.msra.mxu0 0.0
    %603 = vmatpush.msra.mxu0 0.0
    %604 = vmatpush.msra.mxu0 0.0
    %605 = vmatpush.msra.mxu0 0.0
    %606 = vmatpush.msra.mxu0 0.0
    %607 = vmatpush.msra.mxu0 0.0
    %608 = vmatpush.msra.mxu0 0.0
    %609 = vmatpush.msra.mxu0 0.0
    %610 = vmatpush.msra.mxu0 0.0
    %611 = vmatpush.msra.mxu0 0.0
    %612 = vmatpush.msra.mxu0 0.0
    %613 = vmatpush.msra.mxu0 0.0
    %614 = vmatpush.msra.mxu0 0.0
    %615 = vmatpush.msra.mxu0 %v595
    %616 = vmatmul.f32.gmra.mxu0 %v598
    %v617 = vpop.f32.mrf.mxu0
    %v618 = vadd.f32 0.0, %v617
    %619 = vdwg.mxu0
    %620 = vrot.lane.b32.xlu0 %v108, 112
    %v621 = vpop.permute.xlu0 %620
    %v624 = vsel %vm117, %v470, 0
    %626 = vmatpush.msra.mxu0 0.0
    %627 = vmatpush.msra.mxu0 0.0
    %628 = vmatpush.msra.mxu0 0.0
    %629 = vmatpush.msra.mxu0 0.0
    %630 = vmatpush.msra.mxu0 0.0
    %631 = vmatpush.msra.mxu0 0.0
    %632 = vmatpush.msra.mxu0 0.0
    %633 = vmatpush.msra.mxu0 0.0
    %634 = vmatpush.msra.mxu0 0.0
    %635 = vmatpush.msra.mxu0 0.0
    %636 = vmatpush.msra.mxu0 0.0
    %637 = vmatpush.msra.mxu0 0.0
    %638 = vmatpush.msra.mxu0 0.0
    %639 = vmatpush.msra.mxu0 0.0
    %640 = vmatpush.msra.mxu0 0.0
    %641 = vmatpush.msra.mxu0 %v621
    %642 = vmatmul.f32.gmra.mxu0 %v624
    %v643 = vpop.f32.mrf.mxu0
    %v644 = vadd.f32 0.0, %v643
    %645 = vdwg.mxu0
    %646 = vrot.lane.b32.xlu0 %v110, 112
    %v647 = vpop.permute.xlu0 %646
    %v650 = vsel %vm117, %v485, 0
    %652 = vmatpush.msra.mxu0 0.0
    %653 = vmatpush.msra.mxu0 0.0
    %654 = vmatpush.msra.mxu0 0.0
    %655 = vmatpush.msra.mxu0 0.0
    %656 = vmatpush.msra.mxu0 0.0
    %657 = vmatpush.msra.mxu0 0.0
    %658 = vmatpush.msra.mxu0 0.0
    %659 = vmatpush.msra.mxu0 0.0
    %660 = vmatpush.msra.mxu0 0.0
    %661 = vmatpush.msra.mxu0 0.0
    %662 = vmatpush.msra.mxu0 0.0
    %663 = vmatpush.msra.mxu0 0.0
    %664 = vmatpush.msra.mxu0 0.0
    %665 = vmatpush.msra.mxu0 0.0
    %666 = vmatpush.msra.mxu0 0.0
    %667 = vmatpush.msra.mxu0 %v647
    %668 = vmatmul.f32.gmra.mxu0 %v650
    %v669 = vpop.f32.mrf.mxu0
    %v670 = vadd.f32 0.0, %v669
    %671 = vdwg.mxu0
    %672 = vrot.lane.b32.xlu0 %v112, 112
    %v673 = vpop.permute.xlu0 %672
    %v676 = vsel %vm117, %v500, 0
    %678 = vmatpush.msra.mxu0 0.0
    %679 = vmatpush.msra.mxu0 0.0
    %680 = vmatpush.msra.mxu0 0.0
    %681 = vmatpush.msra.mxu0 0.0
    %682 = vmatpush.msra.mxu0 0.0
    %683 = vmatpush.msra.mxu0 0.0
    %684 = vmatpush.msra.mxu0 0.0
    %685 = vmatpush.msra.mxu0 0.0
    %686 = vmatpush.msra.mxu0 0.0
    %687 = vmatpush.msra.mxu0 0.0
    %688 = vmatpush.msra.mxu0 0.0
    %689 = vmatpush.msra.mxu0 0.0
    %690 = vmatpush.msra.mxu0 0.0
    %691 = vmatpush.msra.mxu0 0.0
    %692 = vmatpush.msra.mxu0 0.0
    %693 = vmatpush.msra.mxu0 %v673
    %694 = vmatmul.f32.gmra.mxu0 %v676
    %v695 = vpop.f32.mrf.mxu0
    %v696 = vadd.f32 0.0, %v695
    %697 = vdwg.mxu0
    %698 = vrot.lane.b32.xlu0 %v114, 112
    %v699 = vpop.permute.xlu0 %698
    %v702 = vsel %vm117, %v515, 0
    %704 = vmatpush.msra.mxu0 0.0
    %705 = vmatpush.msra.mxu0 0.0
    %706 = vmatpush.msra.mxu0 0.0
    %707 = vmatpush.msra.mxu0 0.0
    %708 = vmatpush.msra.mxu0 0.0
    %709 = vmatpush.msra.mxu0 0.0
    %710 = vmatpush.msra.mxu0 0.0
    %711 = vmatpush.msra.mxu0 0.0
    %712 = vmatpush.msra.mxu0 0.0
    %713 = vmatpush.msra.mxu0 0.0
    %714 = vmatpush.msra.mxu0 0.0
    %715 = vmatpush.msra.mxu0 0.0
    %716 = vmatpush.msra.mxu0 0.0
    %717 = vmatpush.msra.mxu0 0.0
    %718 = vmatpush.msra.mxu0 0.0
    %719 = vmatpush.msra.mxu0 %v699
    %720 = vmatmul.f32.gmra.mxu0 %v702
    %v721 = vpop.f32.mrf.mxu0
    %v722 = vadd.f32 0.0, %v721
    %723 = vdwg.mxu0
    %726 = vrot.lane.b32.xlu0 %v592, 8
    %v727 = vpop.permute.xlu0 %726
    %728 = vrot.lane.b32.xlu0 %v618, 8
    %v729 = vpop.permute.xlu0 %728
    %734 = vrot.lane.b32.xlu0 %v644, 16
    %v735 = vpop.permute.xlu0 %734
    %736 = vrot.lane.b32.xlu0 %v670, 16
    %v737 = vpop.permute.xlu0 %736
    %742 = vrot.lane.b32.xlu0 %v696, 24
    %v743 = vpop.permute.xlu0 %742
    %744 = vrot.lane.b32.xlu0 %v722, 24
    %v745 = vpop.permute.xlu0 %744
    %v748 = vsel %vm117, %v540, %v727
    %v749 = vsel %vm117, %v566, %v729
    %vm750 = vcmask 130048
    %v751 = vsel %vm750, %v748, %v735
    %v752 = vsel %vm750, %v749, %v737
    %vm753 = vcmask 195584
    %v754 = vsel %vm753, %v751, %v743
    %v755 = vsel %vm753, %v752, %v745
    %v756 = vld [vmem:[%s3] sm:$0xff]
    %v757 = vld [vmem:[%s3 + $0x8] sm:$0xff]
    %v758 = vld [vmem:[%s3 + $0x10] sm:$0xff]
    %v759 = vld [vmem:[%s3 + $0x18] sm:$0xff]
    %v760 = vld [vmem:[%s4] sm:$0x1]
    %v762 = vperm.slane %v760, 0
    %v765 = vsel %vm71, %v754, 0
    %v768 = vsel %vm71, %v755, 0
    %770 = vmatpush.msra.mxu0 0.0
    %771 = vmatpush.msra.mxu0 0.0
    %772 = vmatpush.msra.mxu0 0.0
    %773 = vmatpush.msra.mxu0 0.0
    %774 = vmatpush.msra.mxu0 0.0
    %775 = vmatpush.msra.mxu0 0.0
    %776 = vmatpush.msra.mxu0 0.0
    %777 = vmatpush.msra.mxu0 0.0
    %778 = vmatpush.msra.mxu0 0.0
    %779 = vmatpush.msra.mxu0 0.0
    %780 = vmatpush.msra.mxu0 0.0
    %781 = vmatpush.msra.mxu0 0.0
    %782 = vmatpush.msra.mxu0 %v759
    %783 = vmatpush.msra.mxu0 %v758
    %784 = vmatpush.msra.mxu0 %v757
    %785 = vmatpush.msra.mxu0 %v756
    %786 = vmatmul.f32.gmra.mxu0 %v765
    %v787 = vpop.f32.mrf.mxu0
    %v788 = vadd.f32 %v762, %v787
    %789 = vmatmul.f32.gmra.mxu0 %v768
    %v790 = vpop.f32.mrf.mxu0
    %v791 = vadd.f32 %v762, %v790
    %792 = vdwg.mxu0
    %v793 = vadd.f32 %v788, %v61
    %v794 = vadd.f32 %v791, %v62
    %v795 = vsel %vm71, %v793, 0.0
    %796 = vadd.xlane.f32.xlu0 %v795
    %v797 = vpop.xlane.xlu0 %796
    %v798 = vsel %vm71, %v794, 0.0
    %799 = vadd.xlane.f32.xlu0 %v798
    %v800 = vpop.xlane.xlu0 %799
    %v801 = vrcp.pop 32.0
    %v802 = vmul.f32 32.0, %v801
    %v803 = vsub.f32 1.0, %v802
    %v804 = vmul.f32 %v801, %v803
    %v805 = vadd.f32 %v801, %v804
    %vm806 = vweird.f32 %v801
    %v807 = vsel %vm806, %v801, %v805
    %v808 = vmul.f32 %v797, %v807
    %v809 = vmul.f32 %v800, %v807
    %v810 = vsub.f32 %v793, %v808
    %v811 = vsub.f32 %v794, %v809
    %v812 = vmul.f32 %v810, %v810
    %v813 = vmul.f32 %v811, %v811
    %v814 = vsel %vm71, %v812, 0.0
    %815 = vadd.xlane.f32.xlu0 %v814
    %v816 = vpop.xlane.xlu0 %815
    %v817 = vsel %vm71, %v813, 0.0
    %818 = vadd.xlane.f32.xlu0 %v817
    %v819 = vpop.xlane.xlu0 %818
    %v820 = vmul.f32 %v816, %v807
    %v821 = vmul.f32 %v819, %v807
    %v822 = vadd.f32 %v820, 1e-05
    %v823 = vadd.f32 %v821, 1e-05
    %v824 = vrsqrt.pop %v822
    %v825 = vmul.f32 %v824, %v822
    %v826 = vmul.f32 %v825, %v824
    %v827 = vmul.f32 0.5, %v826
    %v828 = vsub.f32 1.5, %v827
    %v829 = vmul.f32 %v824, %v828
    %vm830 = vweird.f32 %v822
    %vm831 = vweird.f32 %v824
    %vm832 = vmor %vm830, %vm831
    %v833 = vsel %vm832, %v824, %v829
    %v834 = vrsqrt.pop %v823
    %v835 = vmul.f32 %v834, %v823
    %v836 = vmul.f32 %v835, %v834
    %v837 = vmul.f32 0.5, %v836
    %v838 = vsub.f32 1.5, %v837
    %v839 = vmul.f32 %v834, %v838
    %vm840 = vweird.f32 %v823
    %vm841 = vweird.f32 %v834
    %vm842 = vmor %vm840, %vm841
    %v843 = vsel %vm842, %v834, %v839
    %v844 = vmul.f32 %v810, %v833
    %v845 = vmul.f32 %v811, %v843
    %v846 = vld [vmem:[%s5] sm:$0x1]
    %v848 = vperm.slane %v846, 0
    %v850 = vmul.f32 %v848, %v844
    %v851 = vmul.f32 %v848, %v845
    %v852 = vld [vmem:[%s6] sm:$0x1]
    %v854 = vperm.slane %v852, 0
    %v856 = vadd.f32 %v850, %v854
    %v857 = vadd.f32 %v851, %v854
    %v858 = vld [vmem:[%s7] sm:$0xff]
    %v859 = vld [vmem:[%s7 + $0x8] sm:$0xff]
    %v860 = vld [vmem:[%s7 + $0x10] sm:$0xff]
    %v861 = vld [vmem:[%s7 + $0x18] sm:$0xff]
    %v862 = vld [vmem:[%s8] sm:$0x1]
    %v864 = vperm.slane %v862, 0
    %v867 = vsel %vm71, %v856, 0
    %v870 = vsel %vm71, %v857, 0
    %872 = vmatpush.msra.mxu0 0.0
    %873 = vmatpush.msra.mxu0 0.0
    %874 = vmatpush.msra.mxu0 0.0
    %875 = vmatpush.msra.mxu0 0.0
    %876 = vmatpush.msra.mxu0 0.0
    %877 = vmatpush.msra.mxu0 0.0
    %878 = vmatpush.msra.mxu0 0.0
    %879 = vmatpush.msra.mxu0 0.0
    %880 = vmatpush.msra.mxu0 0.0
    %881 = vmatpush.msra.mxu0 0.0
    %882 = vmatpush.msra.mxu0 0.0
    %883 = vmatpush.msra.mxu0 0.0
    %884 = vmatpush.msra.mxu0 %v861
    %885 = vmatpush.msra.mxu0 %v860
    %886 = vmatpush.msra.mxu0 %v859
    %887 = vmatpush.msra.mxu0 %v858
    %888 = vmatmul.f32.gmra.mxu0 %v867
    %v889 = vpop.f32.mrf.mxu0
    %v890 = vadd.f32 %v864, %v889
    %891 = vmatmul.f32.gmra.mxu0 %v870
    %v892 = vpop.f32.mrf.mxu0
    %v893 = vadd.f32 %v864, %v892
    %894 = vdwg.mxu0
    %v895 = vmax.f32 %v890, 0.0
    %v896 = vmax.f32 %v893, 0.0
    %v897 = vld [vmem:[%s9] sm:$0xff]
    %v898 = vld [vmem:[%s9 + $0x8] sm:$0xff]
    %v899 = vld [vmem:[%s9 + $0x10] sm:$0xff]
    %v900 = vld [vmem:[%s9 + $0x18] sm:$0xff]
    %v901 = vld [vmem:[%s9 + $0x20] sm:$0xff]
    %v902 = vld [vmem:[%s9 + $0x28] sm:$0xff]
    %v903 = vld [vmem:[%s9 + $0x30] sm:$0xff]
    %v904 = vld [vmem:[%s9 + $0x38] sm:$0xff]
    %v905 = vld [vmem:[%s10] sm:$0x1]
    %v907 = vperm.slane %v905, 0
    %vm909 = vcmask 523264
    %v911 = vsel %vm909, %v895, 0
    %v914 = vsel %vm909, %v896, 0
    %916 = vmatpush.msra.mxu0 0.0
    %917 = vmatpush.msra.mxu0 0.0
    %918 = vmatpush.msra.mxu0 0.0
    %919 = vmatpush.msra.mxu0 0.0
    %920 = vmatpush.msra.mxu0 0.0
    %921 = vmatpush.msra.mxu0 0.0
    %922 = vmatpush.msra.mxu0 0.0
    %923 = vmatpush.msra.mxu0 0.0
    %924 = vmatpush.msra.mxu0 %v904
    %925 = vmatpush.msra.mxu0 %v903
    %926 = vmatpush.msra.mxu0 %v902
    %927 = vmatpush.msra.mxu0 %v901
    %928 = vmatpush.msra.mxu0 %v900
    %929 = vmatpush.msra.mxu0 %v899
    %930 = vmatpush.msra.mxu0 %v898
    %931 = vmatpush.msra.mxu0 %v897
    %932 = vmatmul.f32.gmra.mxu0 %v911
    %v933 = vpop.f32.mrf.mxu0
    %v934 = vadd.f32 %v907, %v933
    %935 = vmatmul.f32.gmra.mxu0 %v914
    %v936 = vpop.f32.mrf.mxu0
    %v937 = vadd.f32 %v907, %v936
    %938 = vdwg.mxu0
    %v939 = vadd.f32 %v934, %v856
    %v940 = vadd.f32 %v937, %v857
    %v941 = vsel %vm71, %v939, 0.0
    %942 = vadd.xlane.f32.xlu0 %v941
    %v943 = vpop.xlane.xlu0 %942
    %v944 = vsel %vm71, %v940, 0.0
    %945 = vadd.xlane.f32.xlu0 %v944
    %v946 = vpop.xlane.xlu0 %945
    %v947 = vmul.f32 %v943, %v807
    %v948 = vmul.f32 %v946, %v807
    %v949 = vsub.f32 %v939, %v947
    %v950 = vsub.f32 %v940, %v948
    %v951 = vmul.f32 %v949, %v949
    %v952 = vmul.f32 %v950, %v950
    %v953 = vsel %vm71, %v951, 0.0
    %954 = vadd.xlane.f32.xlu0 %v953
    %v955 = vpop.xlane.xlu0 %954
    %v956 = vsel %vm71, %v952, 0.0
    %957 = vadd.xlane.f32.xlu0 %v956
    %v958 = vpop.xlane.xlu0 %957
    %v959 = vmul.f32 %v955, %v807
    %v960 = vmul.f32 %v958, %v807
    %v961 = vadd.f32 %v959, 1e-05
    %v962 = vadd.f32 %v960, 1e-05
    %v963 = vrsqrt.pop %v961
    %v964 = vmul.f32 %v963, %v961
    %v965 = vmul.f32 %v964, %v963
    %v966 = vmul.f32 0.5, %v965
    %v967 = vsub.f32 1.5, %v966
    %v968 = vmul.f32 %v963, %v967
    %vm969 = vweird.f32 %v961
    %vm970 = vweird.f32 %v963
    %vm971 = vmor %vm969, %vm970
    %v972 = vsel %vm971, %v963, %v968
    %v973 = vrsqrt.pop %v962
    %v974 = vmul.f32 %v973, %v962
    %v975 = vmul.f32 %v974, %v973
    %v976 = vmul.f32 0.5, %v975
    %v977 = vsub.f32 1.5, %v976
    %v978 = vmul.f32 %v973, %v977
    %vm979 = vweird.f32 %v962
    %vm980 = vweird.f32 %v973
    %vm981 = vmor %vm979, %vm980
    %v982 = vsel %vm981, %v973, %v978
    %v983 = vmul.f32 %v949, %v972
    %v984 = vmul.f32 %v950, %v982
    %v985 = vld [vmem:[%s11] sm:$0x1]
    %v987 = vperm.slane %v985, 0
    %v989 = vmul.f32 %v987, %v983
    %v990 = vmul.f32 %v987, %v984
    %v991 = vld [vmem:[%s12] sm:$0x1]
    %v993 = vperm.slane %v991, 0
    %v995 = vadd.f32 %v989, %v993
    %v996 = vadd.f32 %v990, %v993
    %997 = vst.msk [vmem:[#allocation5] sm:$0xff] %vm71, %v995
    %998 = vst.msk [vmem:[#allocation5 + $0x8] sm:$0xff] %vm71, %v996
    // Predicated region
    $region58: #{tpu_custom_call.1} parent=1 // pred_check
      _
    $region59: #{tpu_custom_call.1} parent=1 // pred_check_branch
      %1000 = sbr.rel (0) target = $region61
    $region60: #{tpu_custom_call.1} parent=1 // pred_region
      %1002 = vsyncadd [#allocation4], 0
      %s1003 = sshll.u32 [#allocation5], 4
      %s1004 = int_to_ptr.vmem [resolvable:$true] %s1003
      %s1005 = sshll.u32 %s13, 4
      %s1006 = int_to_ptr.hbm [resolvable:$true] %s1005
      %1011 = dma.vmem_to_hbm [thread:$0]  %s1004, 256, %s1006, [#allocation4], 128, 128, 8
    $region61: #{tpu_custom_call.1} parent=1 // pred_fallthru
      _
    // Predicated region
    $region62: #{tpu_custom_call.1} parent=1 // pred_check
      _
    $region63: #{tpu_custom_call.1} parent=1 // pred_check_branch
      %1013 = sbr.rel (0) target = $region65
    $region64: #{tpu_custom_call.1} parent=1 // pred_region
      %1015 = dma.done [#allocation4], 256
    $region65: #{tpu_custom_call.1} parent=1 // pred_fallthru
      _
    %1016 = vsyncpa [#allocation3], 1
    %1017 = vsyncpa [#allocation4], 1

</llo_original>
